<compile_context>
chip_gen: v6e
topology: v6e:2x2x1
jax: 0.10.0
libtpu: 0.0.40
codegen_flags: <defaults>
</compile_context>

<pallas_src>
import math

import jax
import jax.numpy as jnp
from jax.experimental import pallas as pl
from jax.experimental.pallas import tpu as pltpu


def make_positional_encoding(d_model: int, max_seq_len: int, dtype=jnp.float32) -> jnp.ndarray:
    """Deterministic sinusoidal table, identical to the PyTorch __init__ (plain JAX glue)."""
    assert d_model % 2 == 0, "PositionalEncoding requires an even d_model"
    pos = jnp.arange(0, max_seq_len, dtype=jnp.float32)[:, None]                  # (L, 1)
    div_term = jnp.exp(
        jnp.arange(0, d_model, 2, dtype=jnp.float32) * (-math.log(10000.0) / d_model)
    )                                                                              # (D/2,)
    pe = jnp.zeros((max_seq_len, d_model), dtype=jnp.float32)
    pe = pe.at[:, 0::2].set(jnp.sin(pos * div_term))
    pe = pe.at[:, 1::2].set(jnp.cos(pos * div_term))
    # Build at the activation dtype so the forward path never re-casts the full table.
    return pe[None, :, :].astype(dtype)                                            # (1, L, D)


# ----------------------------- small static helpers ---------------------------------------


def _round_up(v: int, m: int) -> int:
    return ((v + m - 1) // m) * m


def _sublane_granule(dtype) -> int:
    """Sublane packing granule: 8 for 32-bit, 16 for 16-bit, 32 for 8-bit dtypes."""
    itemsize = jnp.dtype(dtype).itemsize
    return max(8, 8 * (4 // max(1, itemsize)))


def _divisor_tile(total: int, unit: int, cap: int) -> int:
    """Largest multiple of `unit` that divides `total` and is <= cap (min `unit`).
    Returns `total` when total <= unit or total is not a multiple of unit."""
    if total <= unit or total % unit != 0:
        return total
    k = total // unit
    m = min(k, max(1, cap // unit))
    while total % (unit * m) != 0:
        m -= 1
    return unit * m


def _padded_block_bytes(shape, itemsize: int, granule: int) -> int:
    """VMEM footprint of a block, with the last two dims padded to (granule, 128) tiles."""
    if len(shape) == 1:
        return _round_up(int(shape[0]), 128) * itemsize
    lead = 1
    for d in shape[:-2]:
        lead *= int(d)
    sub, lane = int(shape[-2]), int(shape[-1])
    return lead * _round_up(sub, granule) * _round_up(lane, 128) * itemsize


def _default_target_block_bytes() -> int:
    """~2 MiB x-blocks on 64 MiB-VMEM parts (v7x), ~4 MiB on 128 MiB parts (v5e/v6e)."""
    try:
        vmem = int(pltpu.get_tpu_info().vmem_capacity_bytes)
    except Exception:
        vmem = 64 * 1024 * 1024
    return 4 * 1024 * 1024 if vmem >= 128 * 1024 * 1024 else 2 * 1024 * 1024


# ----------------------------------- kernel ------------------------------------------------


def _add_pe_kernel(x_ref, pe_ref, o_ref):
    # Pure VPU add; pe_ref either matches x_ref's block shape (row layout) or is a
    # (1, t_col) / (1, S, D) block broadcast over the batch sublanes.
    o_ref[...] = x_ref[...] + pe_ref[...]


def positional_encoding_forward(
    x: jnp.ndarray,
    pos_enc: jnp.ndarray,
    *,
    donate_x: bool = True,
    target_block_bytes: int | None = None,
) -> jnp.ndarray:
    """x: (B, S, D); pos_enc: (1, max_seq_len, D). Returns x + pos_enc[:, :S, :].

    When donate_x=True the output aliases x's buffer (in-place update) -- callers that still
    need the original x afterwards should pass donate_x=False.
    """
    B, S, D = x.shape
    _, L, Dp = pos_enc.shape
    assert Dp == D and S <= L

    dtype = x.dtype
    itemsize = jnp.dtype(dtype).itemsize
    granule = _sublane_granule(dtype)
    N = S * D
    if target_block_bytes is None:
        target_block_bytes = _default_target_block_bytes()
    budget_elems = max(128, target_block_bytes // itemsize)
    min_split_bytes = 512 * 1024  # only split a single-block grid if halves stay >= this

    # PE at the activation dtype; if the stored table differs, cast only the used [:S] slice.
    if pos_enc.dtype != dtype:
        pe = pos_enc[:, :S, :].astype(dtype)
    else:
        pe = pos_enc
    Lp = pe.shape[1]

    use_row_layout = (D % 128 == 0) and (S % 8 == 0) and (B < granule)

    if use_row_layout:
        # ---- Layout A: rows = (batch*seq), lanes = d_model (dense sublanes for tiny B) ----
        x2 = x.reshape(B * S, D)
        pe2 = pe.reshape(Lp, D)
        row_cap = max(granule, budget_elems // 128)
        if S <= row_cap:
            t_r = S                              # whole sequence: PE block constant over batch
        elif S % granule == 0:
            t_r = _divisor_tile(S, granule, row_cap)
        else:
            t_r = S                              # oversized block; vmem_limit raised below
        t_d = _divisor_tile(D, 128, max(128, budget_elems // _round_up(t_r, granule)))
        r_blocks = (B * S) // t_r
        d_blocks = D // t_d
        # v7x: keep both TensorCores busy when the grid would collapse to a single block.
        if r_blocks * d_blocks < 2 and d_blocks == 1 and D > 128:
            cand = _divisor_tile(D, 128, max(128, t_d // 2))
            if cand < t_d and cand * _round_up(t_r, granule) * itemsize >= min_split_bytes:
                t_d = cand
                d_blocks = D // t_d
        s_blocks = S // t_r
        pe_map = (lambda j, i: (0, j)) if s_blocks == 1 else (lambda j, i: (i % s_blocks, j))
        grid = (d_blocks, r_blocks)              # rows (batch) iterate fastest -> PE reuse
        x_spec = pl.BlockSpec((t_r, t_d), lambda j, i: (i, j))
        pe_spec = pl.BlockSpec((t_r, t_d), pe_map)
        out_shape = jax.ShapeDtypeStruct((B * S, D), dtype)
        x_block, pe_block = (t_r, t_d), (t_r, t_d)

    elif N % 128 == 0:
        # ---- Layout B: rows = batch, lanes = flattened (seq, d_model) ---------------------
        x2 = x.reshape(B, N)
        pe2 = pe.reshape(1, Lp * D)              # column window reads only the first S*D
        t_row = B if B <= granule else granule
        lane_cap = max(128, budget_elems // _round_up(t_row, granule))
        t_col = _divisor_tile(N, 128, lane_cap)  # divisor of N -> no masked tail stores
        col_blocks = N // t_col
        row_blocks = pl.cdiv(B, t_row)
        if col_blocks * row_blocks < 2 and col_blocks == 1 and N > 128:
            cand = _divisor_tile(N, 128, max(128, t_col // 2))
            if cand < t_col and cand * _round_up(t_row, granule) * itemsize >= min_split_bytes:
                t_col = cand
                col_blocks = N // t_col
        grid = (col_blocks, row_blocks)          # batch iterates fastest -> PE fetched once/col
        x_spec = pl.BlockSpec((t_row, t_col), lambda j, i: (i, j))
        pe_spec = pl.BlockSpec((1, t_col), lambda j, i: (0, j))
        out_shape = jax.ShapeDtypeStruct((B, N), dtype)
        x_block, pe_block = (t_row, t_col), (1, t_col)

    else:
        # ---- Layout C: odd d_model fallback, keep (B, S, D) with full (S, D) blocks -------
        x2 = x
        pe2 = pe[:, :S, :]                       # trailing dims equal full extents
        per_batch = _round_up(S, granule) * _round_up(D, 128) * itemsize
        t_b = int(min(B, max(1, target_block_bytes // per_batch)))
        b_blocks = pl.cdiv(B, t_b)
        if b_blocks < 2 and t_b > 1 and ((t_b // 2) * per_batch) >= min_split_bytes:
            t_b = (t_b + 1) // 2
            b_blocks = pl.cdiv(B, t_b)
        grid = (b_blocks,)
        x_spec = pl.BlockSpec((t_b, S, D), lambda b: (b, 0, 0))
        pe_spec = pl.BlockSpec((1, S, D), lambda b: (0, 0, 0))
        out_shape = jax.ShapeDtypeStruct((B, S, D), dtype)
        x_block, pe_block = (t_b, S, D), (1, S, D)
        # TODO(synk): a huge odd-width S*D per batch element could still exceed v7x's 64 MiB
        # physical VMEM; such shapes would need a lane-padded staging copy instead.

    # Padded-tile VMEM accounting, double-buffered x / out / pe blocks.
    x_bytes = _padded_block_bytes(x_block, itemsize, granule)
    pe_bytes = _padded_block_bytes(pe_block, itemsize, granule)
    needed = 2 * (2 * x_bytes + pe_bytes)
    vmem_limit = int(min(max(32 * 1024 * 1024, 2 * needed), 128 * 1024 * 1024))

    cost = pl.CostEstimate(
        flops=B * N,
        transcendentals=0,
        bytes_accessed=((1 if donate_x else 2) * B * N + N) * itemsize,
    )

    out = pl.pallas_call(
        _add_pe_kernel,
        out_shape=out_shape,
        grid=grid,
        in_specs=[x_spec, pe_spec],
        out_specs=x_spec,
        compiler_params=pltpu.CompilerParams(
            dimension_semantics=("parallel",) * len(grid),
            vmem_limit_bytes=vmem_limit,
        ),
        cost_estimate=cost,
        input_output_aliases=({0: 0} if donate_x else {}),
    )(x2, pe2)

    return out.reshape(B, S, D)


if __name__ == "__main__":
    key = jax.random.PRNGKey(0)

    # Small configs consistent with the module; each exercises a different tiling path.
    tests = [
        (2, 8, 32, 16),    # batch-lane layout: N = S*D multiple of 128, small d_model
        (2, 8, 128, 16),   # row layout: d_model % 128 == 0, small batch
        (2, 8, 20, 16),    # odd-d_model fallback layout
    ]

    for idx, (B, S, d_model, max_seq_len) in enumerate(tests):
        pos_enc = make_positional_encoding(d_model, max_seq_len, dtype=jnp.float32)
        key, sub = jax.random.split(key)
        x = jax.random.normal(sub, (B, S, d_model), dtype=jnp.float32)

        ref = x + pos_enc[:, :S, :]          # reference computed before the donating call
        out = positional_encoding_forward(x, pos_enc)
        out = jax.block_until_ready(out)

        assert out.shape == (B, S, d_model)
        assert jnp.allclose(out, ref, atol=1e-6), f"mismatch vs reference in test {idx}"

    print("KERNEL_OK")
</pallas_src>

<mosaic_0001>
module attributes {stable_mosaic.version = 11 : i64} {
  func.func @_add_pe_kernel(%arg0: i32, %arg1: i32, %arg2: memref<2x256xf32, #tpu.memory_space<vmem>>, %arg3: memref<1x256xf32, #tpu.memory_space<vmem>>, %arg4: memref<2x256xf32, #tpu.memory_space<vmem>>) attributes {dimension_semantics = [#tpu.dimension_semantics<parallel>, #tpu.dimension_semantics<parallel>], iteration_bounds = array<i64: 1, 1>, scalar_prefetch = 0 : i64, scratch_operands = 0 : i64, tpu.core_type = #tpu.core_type<tc>, window_params = [{transform_indices = @transform_0, window_bounds = array<i64: 2, 256>}, {transform_indices = @transform_1, window_bounds = array<i64: 1, 256>}, {transform_indices = @transform_2, window_bounds = array<i64: 2, 256>}]} {
    %c0 = arith.constant 0 : index
    %c0_0 = arith.constant 0 : index
    %0 = vector.load %arg2[%c0, %c0_0] : memref<2x256xf32, #tpu.memory_space<vmem>>, vector<2x256xf32>
    %c0_1 = arith.constant 0 : index
    %c0_2 = arith.constant 0 : index
    %1 = vector.load %arg3[%c0_1, %c0_2] : memref<1x256xf32, #tpu.memory_space<vmem>>, vector<1x256xf32>
    %2 = vector.broadcast %1 : vector<1x256xf32> to vector<2x256xf32>
    %3 = arith.addf %0, %2 : vector<2x256xf32>
    %c0_3 = arith.constant 0 : index
    %c0_4 = arith.constant 0 : index
    %4 = vector.load %arg4[%c0_3, %c0_4] : memref<2x256xf32, #tpu.memory_space<vmem>>, vector<2x256xf32>
    tpu.vector_store %arg4[%c0_3, %c0_4], %3 {strides = array<i32>} : memref<2x256xf32, #tpu.memory_space<vmem>>, vector<2x256xf32>,
    return
  }
  func.func @transform_0(%arg0: i32, %arg1: i32) -> (i32, i32) {
    %c0_i32 = arith.constant 0 : i32
    return %arg1, %arg0 : i32, i32
  }
  func.func @transform_1(%arg0: i32, %arg1: i32) -> (i32, i32) {
    %c0_i32 = arith.constant 0 : i32
    %c0_i32_0 = arith.constant 0 : i32
    return %c0_i32, %arg0 : i32, i32
  }
  func.func @transform_2(%arg0: i32, %arg1: i32) -> (i32, i32) {
    %c0_i32 = arith.constant 0 : i32
    return %arg1, %arg0 : i32, i32
  }
}

</mosaic_0001>

<llo_original>
// kernel: tpu_custom_call.1
$region0: #{tpu_custom_call.1}
  #allocation0 [shape = 'u32[]', space=smem, size = 0x4, offset = 0x4, fixed_abs, tag = 'smem constant byte address 0x4 - core index']
  #allocation1 [shape = 'u32[144,128]{1,0:T(1,128)}', space=vmem, size = 0x12000, scoped, tag = 'internal scratch']
  %s0 = inlined_call_operand.hbm [shape: f32[2,256], index: 0, kind: input, shape index: {}, may-alias: {0,2}]
  %s1 = inlined_call_operand.vmem [shape: f32[1,512], index: 1, kind: input, shape index: {}]
  %s2 = inlined_call_operand.hbm [shape: f32[2,256], index: 2, kind: output, shape index: {}, may-alias: {0,2}]
  %s3 = sld [smem:[#allocation0]]
  $region22: #{tpu_custom_call.1} parent=0
    _
  %s5 = ssub.s32 1, %s3
  %s6 = scalar_select 0, %s5, %s3
  $region1: #{tpu_custom_call.1} parent=0
    #allocation2 [shape = 'u8[2048]{0}', space=vmem, size = 0x800, scoped, tag = 'input window, operand 0, single buffered']
    #allocation3 [shape = 's32[1]{0}', space=sflag, size = 0x4, scoped, tag = 'scoped memory for tpu_custom_call.1']
    #allocation4 [shape = 's32[1]{0}', space=sflag, size = 0x4, scoped, tag = 'scoped memory for tpu_custom_call.1']
    #allocation5 [shape = 'u8[2048]{0}', space=vmem, size = 0x800, scoped, tag = 'output window, operand 0, single buffered']
    %7 = vsyncpa [#allocation3], 0
    %8 = vsyncpa [#allocation4], 0
    // Predicated region
    $region2: #{tpu_custom_call.1} parent=1 // pred_check
      _
    $region3: #{tpu_custom_call.1} parent=1 // pred_check_branch
      %10 = sbr.rel (0) target = $region5
    $region4: #{tpu_custom_call.1} parent=1 // pred_region
      %s12 = ssub.s32 64, 64
      %13 = vsyncadd [#allocation3], %s12
      %s15 = sshll.u32 [#allocation2], 4
      %s16 = int_to_ptr.vmem [resolvable:$true] %s15
      %18 = dma.hbm_to_vmem [thread:$0]  %s0, 64, %s16, [#allocation3]
    $region5: #{tpu_custom_call.1} parent=1 // pred_fallthru
      _
    // Predicated region
    $region6: #{tpu_custom_call.1} parent=1 // pred_check
      _
    $region7: #{tpu_custom_call.1} parent=1 // pred_check_branch
      %20 = sbr.rel (0) target = $region9
    $region8: #{tpu_custom_call.1} parent=1 // pred_region
      _
    $region9: #{tpu_custom_call.1} parent=1 // pred_fallthru
      _
    // Predicated region
    $region10: #{tpu_custom_call.1} parent=1 // pred_check
      _
    $region11: #{tpu_custom_call.1} parent=1 // pred_check_branch
      %22 = sbr.rel (0) target = $region13
    $region12: #{tpu_custom_call.1} parent=1 // pred_region
      %23 = dma.done [#allocation3], 64
    $region13: #{tpu_custom_call.1} parent=1 // pred_fallthru
      _
    %v24 = vld [vmem:[#allocation2] sm:$0xf]
    %v25 = vld [vmem:[%s1] sm:$0x3]
    %v27 = vlaneseq
    %v28 = vshrl.u32 %v27, 7
    %v29 = vsub.s32 0, %v28
    %v30 = vrot.slane %v25, %v29
    %v31 = vlaneseq
    %v32 = vshrl.u32 %v31, 7
    %v33 = vsub.s32 1, %v32
    %v34 = vrot.slane %v25, %v33
    %v35 = vcombine.low %v30, %v34
    %v37 = vunpack.c.l.s4 1983009808
    %v38 = vunpack.c.0.s8 %v37
    %v39 = vlaneseq
    %v40 = vshrl.u32 %v39, 7
    %v41 = vsub.s32 %v38, %v40
    %v42 = vrot.slane %v35, %v41
    %v44 = vadd.f32 %v24, %v42
    %45 = vst [vmem:[#allocation5] sm:$0xf] %v44
    // Predicated region
    $region14: #{tpu_custom_call.1} parent=1 // pred_check
      _
    $region15: #{tpu_custom_call.1} parent=1 // pred_check_branch
      %47 = sbr.rel (0) target = $region17
    $region16: #{tpu_custom_call.1} parent=1 // pred_region
      %s49 = ssub.s32 64, 64
      %50 = vsyncadd [#allocation4], %s49
      %s52 = sshll.u32 [#allocation5], 4
      %s53 = int_to_ptr.vmem [resolvable:$true] %s52
      %55 = dma.vmem_to_hbm [thread:$0]  %s53, 64, %s2, [#allocation4]
    $region17: #{tpu_custom_call.1} parent=1 // pred_fallthru
      _
    // Predicated region
    $region18: #{tpu_custom_call.1} parent=1 // pred_check
      _
    $region19: #{tpu_custom_call.1} parent=1 // pred_check_branch
      %57 = sbr.rel (0) target = $region21
    $region20: #{tpu_custom_call.1} parent=1 // pred_region
      %58 = dma.done [#allocation4], 64
    $region21: #{tpu_custom_call.1} parent=1 // pred_fallthru
      _
    %59 = vsyncpa [#allocation3], 1
    %60 = vsyncpa [#allocation4], 1

</llo_original>
